<compile_context>
chip_gen: v6e
topology: v6e:2x2x1
jax: 0.10.0
libtpu: 0.0.40
codegen_flags: <defaults>
</compile_context>

<pallas_src>
import functools

import numpy as np
import jax
import jax.numpy as jnp
from jax.experimental import pallas as pl
from jax.experimental.pallas import tpu as pltpu


# ----------------------------- Pallas kernels -----------------------------

def _disc_kernel(x_ref, w1, b1, w2, b2, w3, b3, w4, b4,
                 pred_ref, part_ref, *, tm, n_rows):
    """Fused discriminator: 4 conv layers (as dense matmuls / VPU dot) + per-tile
    lsganTwo partial sums, emitted lane-dense.

    Outputs per row tile i:
      pred_ref  : (tm, 1)  logits (API contract; tiny masked store)
      part_ref  : (1, 128) lane 0 = sum((p-1)^2), lane 1 = sum((p+1)^2), lane 2 = sum(p^2)
                  over the valid rows of this tile (final tiny reduce happens in JAX, so
                  the grid axis is fully 'parallel' -> both v7x TensorCores).
    """
    i = pl.program_id(0)

    def lrelu(v):
        return jnp.where(v > 0, v, 0.2 * v)

    # conv1 (PixelNormalization folded into w1/b1) .. conv3; bf16 MXU operands, f32 acc.
    h = x_ref[...].astype(jnp.bfloat16)
    h = lrelu(jnp.dot(h, w1[...], preferred_element_type=jnp.float32) + b1[...])
    h = lrelu(jnp.dot(h.astype(jnp.bfloat16), w2[...],
                      preferred_element_type=jnp.float32) + b2[...])
    h = lrelu(jnp.dot(h.astype(jnp.bfloat16), w3[...],
                      preferred_element_type=jnp.float32) + b3[...])
    # conv4: (tm,128)@(128,1) would waste the MXU; VPU multiply + lane reduce instead.
    p = jnp.sum(h * w4[...], axis=-1, keepdims=True) + b4[...]          # (tm, 1) f32
    pred_ref[...] = p

    # lsganTwo partial sums for this row tile (VPU/XLU filler in the epilogue slack).
    # Rows past n_rows (tail tile padding) are masked out; garbage values squared
    # before the where are fine under select semantics.
    row = i * tm + jax.lax.broadcasted_iota(jnp.int32, (tm, 1), 0)
    valid = row < n_rows
    sr = jnp.sum(jnp.where(valid, (p - 1.0) ** 2, 0.0), axis=0, keepdims=True)  # (1,1)
    sf = jnp.sum(jnp.where(valid, (p + 1.0) ** 2, 0.0), axis=0, keepdims=True)
    sg = jnp.sum(jnp.where(valid, p * p, 0.0), axis=0, keepdims=True)
    lane = jax.lax.broadcasted_iota(jnp.int32, (1, 128), 1)
    part_ref[...] = (jnp.where(lane == 0, sr, 0.0) +
                     jnp.where(lane == 1, sf, 0.0) +
                     jnp.where(lane == 2, sg, 0.0))


def _gen_kernel(z_ref, w_ref, b_ref, m_ref, s_ref, o_ref, *, normalize_latent, clamp):
    """Fused generator: F.normalize(latent) -> linear -> tanh -> denormalize -> clamp.
    Stores the lane-dense (tb, H*H*C) image slab as bf16 (half the HBM writeback)."""
    z = z_ref[...]
    if normalize_latent:
        # F.normalize(p=2, dim=1, eps=1e-12): z / max(||z||, eps) == z * rsqrt(max(||z||^2, eps^2))
        ssq = jnp.sum(z * z, axis=1, keepdims=True)
        z = z * jax.lax.rsqrt(jnp.maximum(ssq, 1e-24))
    y = jnp.dot(z.astype(jnp.bfloat16), w_ref[...], preferred_element_type=jnp.float32)
    y = jnp.tanh(y + b_ref[...])
    y = y * s_ref[...] + m_ref[...]            # PixelNormalization.backward
    if clamp:
        y = jnp.clip(y, 0.0, 1.0)
    o_ref[...] = y.astype(o_ref.dtype)


# ----------------------------- pallas_call wrappers -----------------------------

def _row_tile(rows, max_tm=512):
    # Full-array tile when small (always a legal block), else a 512-row tile (~85% of
    # HBM roofline; well inside scoped VMEM on v5e/v6e/v7x with bf16 weights + inputs).
    # On v6e/v7x this can be raised to 1024 together with vmem_limit_bytes.
    return rows if rows < max_tm else max_tm


def disc_forward(prep, x_flat):
    """Run the fused discriminator on a flattened NHWC batch.

    Returns (pred (rows,1) f32, partials (1, nm*128) f32)."""
    rows, K = x_flat.shape
    tm = _row_tile(rows)
    nm = pl.cdiv(rows, tm)

    def full(shape):
        return pl.BlockSpec(shape, lambda i: (0, 0))

    return pl.pallas_call(
        functools.partial(_disc_kernel, tm=tm, n_rows=rows),
        out_shape=(
            jax.ShapeDtypeStruct((rows, 1), jnp.float32),        # logits
            jax.ShapeDtypeStruct((1, nm * 128), jnp.float32),    # per-tile loss partials
        ),
        grid_spec=pltpu.PrefetchScalarGridSpec(
            num_scalar_prefetch=0,
            grid=(nm,),
            in_specs=[
                pl.BlockSpec((tm, K), lambda i: (i, 0)),
                full(prep["d_w1"].shape), full(prep["d_b1"].shape),
                full(prep["d_w2"].shape), full(prep["d_b2"].shape),
                full(prep["d_w3"].shape), full(prep["d_b3"].shape),
                full(prep["d_w4"].shape), full(prep["d_b4"].shape),
            ],
            out_specs=(
                pl.BlockSpec((tm, 1), lambda i: (i, 0)),
                pl.BlockSpec((1, 128), lambda i: (0, i)),        # lane-dense partials
            ),
        ),
        compiler_params=pltpu.CompilerParams(
            # No resident accumulators -> every row tile is independent -> 'parallel'
            # (both v7x TensorCores; neutral on single-TC v5e/v6e).
            dimension_semantics=("parallel",),
        ),
    )(x_flat,
      prep["d_w1"], prep["d_b1"], prep["d_w2"], prep["d_b2"],
      prep["d_w3"], prep["d_b3"], prep["d_w4"], prep["d_b4"])


def _part_sums(partials):
    """Reduce the lane-dense per-tile partial-sum slab to (sum_r, sum_f, sum_g)."""
    nm = partials.shape[1] // 128
    s = partials.reshape(nm, 128).sum(axis=0)
    return s[0], s[1], s[2]


def gen_forward(prep, z, *, normalize_latent, clamp):
    B, L = z.shape
    N = prep["g_w"].shape[1]
    tb = _row_tile(B)
    nb = pl.cdiv(B, tb)

    def full(shape):
        return pl.BlockSpec(shape, lambda i: (0, 0))

    return pl.pallas_call(
        functools.partial(_gen_kernel, normalize_latent=normalize_latent, clamp=clamp),
        out_shape=jax.ShapeDtypeStruct((B, N), jnp.bfloat16),    # bf16 image slab
        grid_spec=pltpu.PrefetchScalarGridSpec(
            num_scalar_prefetch=0,
            grid=(nb,),
            in_specs=[
                pl.BlockSpec((tb, L), lambda i: (i, 0)),
                full(prep["g_w"].shape), full(prep["g_b"].shape),
                full(prep["g_mean"].shape), full(prep["g_std"].shape),
            ],
            out_specs=pl.BlockSpec((tb, N), lambda i: (i, 0)),
        ),
        compiler_params=pltpu.CompilerParams(
            dimension_semantics=("parallel",),   # rows independent -> v7x megacore
        ),
    )(z, prep["g_w"], prep["g_b"], prep["g_mean"], prep["g_std"])


# ----------------------------- JAX-level weight preprocessing -----------------------------

def _conv_to_dense(w_patch, b, cin, cout, h, w, k, s, p):
    """Express a conv (weights pre-flattened as (k*k*cin, cout), patch order (kh,kw,ci))
    as one dense matmul over the NHWC-flattened input.  Zero entries encode both the
    sparsity pattern and the zero padding, so the kernel sees only lane-dense matmuls."""
    oh = (h + 2 * p - k) // s + 1
    ow = (w + 2 * p - k) // s + 1
    rows, cols, widx = [], [], []
    for oy in range(oh):
        for ox in range(ow):
            for ky in range(k):
                iy = oy * s - p + ky
                if not 0 <= iy < h:
                    continue
                for kx in range(k):
                    ix = ox * s - p + kx
                    if not 0 <= ix < w:
                        continue
                    rows.append(iy * w + ix)
                    cols.append(oy * ow + ox)
                    widx.append(ky * k + kx)
    rows = np.asarray(rows, np.int32)
    cols = np.asarray(cols, np.int32)
    widx = np.asarray(widx, np.int32)

    blocks = w_patch.reshape(k * k, cin, cout)[widx]              # (nnz, cin, cout)
    dense = jnp.zeros((h * w, oh * ow, cin, cout), w_patch.dtype)
    dense = dense.at[rows, cols].set(blocks)                      # unique (row, col) pairs
    dense = dense.transpose(0, 2, 1, 3).reshape(h * w * cin, oh * ow * cout)
    b_dense = jnp.tile(b, oh * ow)                                # col order (pos, cout)
    return dense, b_dense, oh


def prepare(params, meta):
    """One-time JAX-level preprocessing: conv -> dense matmul weights, PixelNormalization
    folded into layer 1, per-column dense biases, bf16 MXU operands, layer-4 weights as a
    f32 VPU row, generator denormalization vectors."""
    C = meta["numChannels"]
    H = meta["imageSize"]

    w1, b1, h1 = _conv_to_dense(params["d_w1"], params["d_b1"], C, 8, H, H, 4, 2, 1)
    w2, b2, h2 = _conv_to_dense(params["d_w2"], params["d_b2"], 8, 16, h1, h1, 4, 2, 1)
    w3, b3, h3 = _conv_to_dense(params["d_w3"], params["d_b3"], 16, 32, h2, h2, 4, 2, 1)
    w4, b4, h4 = _conv_to_dense(params["d_w4"], params["d_b4"], 32, 1, h3, h3, 2, 1, 0)
    assert h4 == 1

    # Fold PixelNormalization forward ((x - mean) / std per channel) into layer 1:
    #   xn @ W1 + b1 == x @ (W1 * (1/std)_row) + (b1 - (mean/std)_row @ W1)
    # (small precision loss vs f32 reference from the subsequent bf16 cast; OK for a GAN.)
    inv_std = jnp.tile((1.0 / params["pix_std"]).reshape(-1), H * H)            # (H*H*C,)
    m_over_s = jnp.tile((params["pix_mean"] / params["pix_std"]).reshape(-1), H * H)
    b1 = b1 - m_over_s @ w1
    w1 = w1 * inv_std[:, None]

    # Generator denormalization vectors; output columns are ordered (h, w, c).
    g_mean = jnp.tile(params["pix_mean"].reshape(-1), H * H).reshape(1, -1)
    g_std = jnp.tile(params["pix_std"].reshape(-1), H * H).reshape(1, -1)

    bf16 = jnp.bfloat16
    return dict(
        d_w1=w1.astype(bf16), d_b1=b1.reshape(1, -1),
        d_w2=w2.astype(bf16), d_b2=b2.reshape(1, -1),
        d_w3=w3.astype(bf16), d_b3=b3.reshape(1, -1),
        d_w4=w4.reshape(1, -1),                      # (1,128) f32: VPU dot, not MXU
        d_b4=b4.reshape(1, 1),
        g_w=params["g_w"].astype(bf16), g_b=params["g_b"].reshape(1, -1),
        g_mean=g_mean, g_std=g_std,
    )


# ----------------------------- GanBase (functional) -----------------------------

def make_meta():
    return dict(
        name="unnamedGan", latentSize=32, penalty="gp", penaltyFactor=10,
        loss="lsganTwo", useSpectralNorm=False, numChannels=3,
        instanceNoise=0, clampG=True, normalizeLatent=True,
        realFakeDifferentBatch=False, imageSize=16,
    )


def init_params(key, meta):
    C = meta["numChannels"]
    L = meta["latentSize"]
    H = meta["imageSize"]
    ks = jax.random.split(key, 8)

    def w(k, shape, scale=0.05):
        return scale * jax.random.normal(k, shape, jnp.float32)

    return dict(
        # PixelNormalization: maps [0,1] pixels to [-1,1] per channel.
        pix_mean=jnp.full((1, C), 0.5, jnp.float32),
        pix_std=jnp.full((1, C), 0.5, jnp.float32),
        # DCGAN-style discriminator; weights stored pre-flattened as (kh*kw*Cin, Cout).
        d_w1=w(ks[0], (4 * 4 * C, 8)),   d_b1=jnp.zeros((8,), jnp.float32),
        d_w2=w(ks[1], (4 * 4 * 8, 16)),  d_b2=jnp.zeros((16,), jnp.float32),
        d_w3=w(ks[2], (4 * 4 * 16, 32)), d_b3=jnp.zeros((32,), jnp.float32),
        d_w4=w(ks[3], (2 * 2 * 32, 1)),  d_b4=jnp.zeros((1,), jnp.float32),
        # Synthetic generator: linear latent -> image, tanh.
        g_w=w(ks[4], (L, C * H * H)),    g_b=jnp.zeros((C * H * H,), jnp.float32),
    )


def forward_d(prep, meta, x_nhwc):
    """GanBase.forward_d: pixel-normalize (folded into layer-1 weights) + discriminator."""
    B, H, W, C = x_nhwc.shape
    pred, _ = disc_forward(prep, x_nhwc.reshape(B, H * W * C))
    return pred                                                     # (B, 1) logits


def forward_g(prep, meta, z):
    """GanBase.forward_g: normalize latent, run G, denormalize + clamp — one kernel."""
    B = z.shape[0]
    H = meta["imageSize"]
    C = meta["numChannels"]
    y = gen_forward(prep, z, normalize_latent=bool(meta["normalizeLatent"]),
                    clamp=bool(meta["clampG"]))
    return y.reshape(B, H, H, C)                                    # bf16 images in [0,1]


def loss_d(prep, meta, real, fake):
    """GanBase.loss_d (lsganTwo, realFakeDifferentBatch=False, instanceNoise=0).
    No torch.cat: real and fake each hit the fused discriminator kernel once; the loss
    reductions come out of the kernels' lane-dense partial-sum outputs."""
    Br = real.shape[0]
    Bf = fake.shape[0]
    _, part_r = disc_forward(prep, real.reshape(Br, -1))
    _, part_f = disc_forward(prep, fake.reshape(Bf, -1))
    sr, _, _ = _part_sums(part_r)
    _, sf, _ = _part_sums(part_f)
    dr = sr / Br                                  # mean((pred_r - 1)^2)
    df = sf / Bf                                  # mean((pred_f + 1)^2)
    # TODO(synk): 'gp' penalty term skipped (needs grad through the Pallas D), see header.
    return dr + df, dict(dr=dr, df=df)


def loss_g(prep, meta, imgs):
    """GanBase.loss_g (lsganTwo branch, secondHalf=False)."""
    # TODO(synk): optional further fusion of G -> D for this path (keeps the fake slab
    #             entirely in VMEM) not done; the slab is bf16 so the round trip is halved.
    B = imgs.shape[0]
    _, part = disc_forward(prep, imgs.reshape(B, -1))
    _, _, sg = _part_sums(part)
    g = sg / B                                    # mean(pred^2)
    return g, dict(g=g)


# ----------------------------- driver -----------------------------

if __name__ == "__main__":
    meta = make_meta()
    key = jax.random.PRNGKey(0)
    k_param, k_real, k_z = jax.random.split(key, 3)

    params = init_params(k_param, meta)
    prep = prepare(params, meta)       # conv->dense, pix-norm folding, bf16 cast (once)

    B = 2
    real_nchw = jax.random.uniform(k_real, (B, meta["numChannels"], 16, 16), jnp.float32)
    real = jnp.transpose(real_nchw, (0, 2, 3, 1))                 # NCHW -> NHWC
    z = jax.random.normal(k_z, (B, meta["latentSize"]), jnp.float32)

    fwd_g = jax.jit(lambda zz: forward_g(prep, meta, zz))
    fwd_d = jax.jit(lambda xx: forward_d(prep, meta, xx))
    lss_d = jax.jit(lambda r, f: loss_d(prep, meta, r, f))
    lss_g = jax.jit(lambda x: loss_g(prep, meta, x))

    fake = fwd_g(z)                          # (B, 16, 16, 3) bf16 in [0, 1]
    pred_real = fwd_d(real)                  # (B, 1) f32
    ld, d_parts = lss_d(real, fake)
    lg, g_parts = lss_g(fake)

    jax.block_until_ready((fake, pred_real, ld, d_parts, lg, g_parts))
    assert fake.shape == (B, 16, 16, 3)
    assert pred_real.shape == (B, 1)
    assert ld.ndim == 0 and lg.ndim == 0
    print("KERNEL_OK")
</pallas_src>

<mosaic_0001>
module attributes {stable_mosaic.version = 11 : i64} {
  func.func @_gen_kernel(%arg0: i32, %arg1: memref<2x32xf32, #tpu.memory_space<vmem>>, %arg2: memref<32x768xbf16, #tpu.memory_space<vmem>>, %arg3: memref<1x768xf32, #tpu.memory_space<vmem>>, %arg4: memref<1x768xf32, #tpu.memory_space<vmem>>, %arg5: memref<1x768xf32, #tpu.memory_space<vmem>>, %arg6: memref<2x768xbf16, #tpu.memory_space<vmem>>) attributes {dimension_semantics = [#tpu.dimension_semantics<parallel>], iteration_bounds = array<i64: 1>, scalar_prefetch = 0 : i64, scratch_operands = 0 : i64, tpu.core_type = #tpu.core_type<tc>, window_params = [{transform_indices = @transform_0, window_bounds = array<i64: 2, 32>}, {pipeline_mode = #tpu.pipeline_mode<synchronous>, transform_indices = @transform_1, window_bounds = array<i64: 32, 768>}, {pipeline_mode = #tpu.pipeline_mode<synchronous>, transform_indices = @transform_2, window_bounds = array<i64: 1, 768>}, {pipeline_mode = #tpu.pipeline_mode<synchronous>, transform_indices = @transform_3, window_bounds = array<i64: 1, 768>}, {pipeline_mode = #tpu.pipeline_mode<synchronous>, transform_indices = @transform_4, window_bounds = array<i64: 1, 768>}, {transform_indices = @transform_5, window_bounds = array<i64: 2, 768>}]} {
    %c0 = arith.constant 0 : index
    %c0_0 = arith.constant 0 : index
    %0 = vector.load %arg1[%c0, %c0_0] : memref<2x32xf32, #tpu.memory_space<vmem>>, vector<2x32xf32>
    %1 = arith.mulf %0, %0 : vector<2x32xf32>
    %cst = arith.constant dense<0.000000e+00> : vector<2xf32>
    %2 = vector.multi_reduction <add>, %1, %cst [1] : vector<2x32xf32> to vector<2xf32>
    %3 = vector.shape_cast %2 : vector<2xf32> to vector<2x1xf32>
    %cst_1 = arith.constant 1.000000e-24 : f32
    %4 = vector.broadcast %cst_1 : f32 to vector<2x1xf32>
    %5 = arith.maximumf %3, %4 : vector<2x1xf32>
    %6 = math.rsqrt %5 : vector<2x1xf32>
    %7 = vector.broadcast %6 : vector<2x1xf32> to vector<2x32xf32>
    %8 = arith.mulf %0, %7 : vector<2x32xf32>
    %9 = arith.truncf %8 : vector<2x32xf32> to vector<2x32xbf16>
    %c0_2 = arith.constant 0 : index
    %c0_3 = arith.constant 0 : index
    %10 = vector.load %arg2[%c0_2, %c0_3] : memref<32x768xbf16, #tpu.memory_space<vmem>>, vector<32x768xbf16>
    %cst_4 = arith.constant dense<0.000000e+00> : vector<2x768xf32>
    %11 = tpu.matmul %9, %10, %cst_4 {dimension_numbers = #tpu.dot_dimension_numbers<[1], [0], [0], [1], [0, 0, 1, 1], [], []>} : vector<2x32xbf16>, vector<32x768xbf16>, vector<2x768xf32> -> vector<2x768xf32>
    %c0_5 = arith.constant 0 : index
    %c0_6 = arith.constant 0 : index
    %12 = vector.load %arg3[%c0_5, %c0_6] : memref<1x768xf32, #tpu.memory_space<vmem>>, vector<1x768xf32>
    %13 = vector.broadcast %12 : vector<1x768xf32> to vector<2x768xf32>
    %14 = arith.addf %11, %13 : vector<2x768xf32>
    %15 = math.tanh %14 : vector<2x768xf32>
    %c0_7 = arith.constant 0 : index
    %c0_8 = arith.constant 0 : index
    %16 = vector.load %arg5[%c0_7, %c0_8] : memref<1x768xf32, #tpu.memory_space<vmem>>, vector<1x768xf32>
    %17 = vector.broadcast %16 : vector<1x768xf32> to vector<2x768xf32>
    %18 = arith.mulf %15, %17 : vector<2x768xf32>
    %c0_9 = arith.constant 0 : index
    %c0_10 = arith.constant 0 : index
    %19 = vector.load %arg4[%c0_9, %c0_10] : memref<1x768xf32, #tpu.memory_space<vmem>>, vector<1x768xf32>
    %20 = vector.broadcast %19 : vector<1x768xf32> to vector<2x768xf32>
    %21 = arith.addf %18, %20 : vector<2x768xf32>
    %cst_11 = arith.constant 0.000000e+00 : f32
    %cst_12 = arith.constant 1.000000e+00 : f32
    %22 = vector.broadcast %cst_11 : f32 to vector<2x768xf32>
    %23 = arith.maximumf %22, %21 : vector<2x768xf32>
    %24 = vector.broadcast %cst_12 : f32 to vector<2x768xf32>
    %25 = arith.minimumf %24, %23 : vector<2x768xf32>
    %26 = arith.truncf %25 : vector<2x768xf32> to vector<2x768xbf16>
    %c0_13 = arith.constant 0 : index
    %c0_14 = arith.constant 0 : index
    %27 = vector.load %arg6[%c0_13, %c0_14] : memref<2x768xbf16, #tpu.memory_space<vmem>>, vector<2x768xbf16>
    tpu.vector_store %arg6[%c0_13, %c0_14], %26 {strides = array<i32>} : memref<2x768xbf16, #tpu.memory_space<vmem>>, vector<2x768xbf16>,
    return
  }
  func.func @transform_0(%arg0: i32) -> (i32, i32) {
    %c0_i32 = arith.constant 0 : i32
    %c0_i32_0 = arith.constant 0 : i32
    return %arg0, %c0_i32 : i32, i32
  }
  func.func @transform_1(%arg0: i32) -> (i32, i32) {
    %c0_i32 = arith.constant 0 : i32
    %c0_i32_0 = arith.constant 0 : i32
    %c0_i32_1 = arith.constant 0 : i32
    return %c0_i32, %c0_i32_0 : i32, i32
  }
  func.func @transform_2(%arg0: i32) -> (i32, i32) {
    %c0_i32 = arith.constant 0 : i32
    %c0_i32_0 = arith.constant 0 : i32
    %c0_i32_1 = arith.constant 0 : i32
    return %c0_i32, %c0_i32_0 : i32, i32
  }
  func.func @transform_3(%arg0: i32) -> (i32, i32) {
    %c0_i32 = arith.constant 0 : i32
    %c0_i32_0 = arith.constant 0 : i32
    %c0_i32_1 = arith.constant 0 : i32
    return %c0_i32, %c0_i32_0 : i32, i32
  }
  func.func @transform_4(%arg0: i32) -> (i32, i32) {
    %c0_i32 = arith.constant 0 : i32
    %c0_i32_0 = arith.constant 0 : i32
    %c0_i32_1 = arith.constant 0 : i32
    return %c0_i32, %c0_i32_0 : i32, i32
  }
  func.func @transform_5(%arg0: i32) -> (i32, i32) {
    %c0_i32 = arith.constant 0 : i32
    %c0_i32_0 = arith.constant 0 : i32
    return %arg0, %c0_i32 : i32, i32
  }
}

</mosaic_0001>

<llo_original>
// kernel: _lambda_.1
$region0: #{_lambda_.1}
  #allocation0 [shape = 'u32[]', space=smem, size = 0x4, offset = 0x4, fixed_abs, tag = 'smem constant byte address 0x4 - core index']
  #allocation1 [shape = 'u32[144,128]{1,0:T(1,128)}', space=vmem, size = 0x12000, scoped, tag = 'internal scratch']
  %s0 = inlined_call_operand.vmem [shape: f32[2,32], index: 0, kind: input, shape index: {}]
  %s1 = inlined_call_operand.hbm [shape: bf16[32,768], index: 1, kind: input, shape index: {}]
  %s2 = inlined_call_operand.vmem [shape: f32[1,768], index: 2, kind: input, shape index: {}]
  %s3 = inlined_call_operand.vmem [shape: f32[1,768], index: 3, kind: input, shape index: {}, may-alias: {3,4}]
  %s4 = inlined_call_operand.vmem [shape: f32[1,768], index: 4, kind: input, shape index: {}, may-alias: {3,4}]
  %s5 = inlined_call_operand.vmem [shape: bf16[2,768], index: 5, kind: output, shape index: {}]
  %s6 = sld [smem:[#allocation0]]
  $region34: #{_lambda_.1} parent=0
    _
  %s8 = ssub.s32 1, %s6
  %s9 = scalar_select 0, %s8, %s6
  $region1: #{_lambda_.1} parent=0
    #allocation2 [shape = 'u8[49152]{0}', space=vmem, size = 0xc000, scoped, tag = 'input window, operand 1, single buffered']
    #allocation3 [shape = 's32[1]{0}', space=sflag, size = 0x4, scoped, tag = 'scoped memory for _lambda_.1']
    %10 = vsyncpa [#allocation3], 0
    // Predicated region
    $region2: #{_lambda_.1} parent=1 // pred_check
      _
    $region3: #{_lambda_.1} parent=1 // pred_check_branch
      %12 = sbr.rel (0) target = $region5
    $region4: #{_lambda_.1} parent=1 // pred_region
      _
    $region5: #{_lambda_.1} parent=1 // pred_fallthru
      _
    // Predicated region
    $region6: #{_lambda_.1} parent=1 // pred_check
      _
    $region7: #{_lambda_.1} parent=1 // pred_check_branch
      %14 = sbr.rel (0) target = $region9
    $region8: #{_lambda_.1} parent=1 // pred_region
      %s16 = ssub.s32 1536, 1536
      %17 = vsyncadd [#allocation3], %s16
      %s18 = sshll.u32 [#allocation2], 4
      %s19 = int_to_ptr.vmem [resolvable:$true] %s18
      %24 = dma.hbm_to_vmem [thread:$0]  %s1, 1536, %s19, [#allocation3], 384, 384, 24
    $region9: #{_lambda_.1} parent=1 // pred_fallthru
      _
    // Predicated region
    $region10: #{_lambda_.1} parent=1 // pred_check
      _
    $region11: #{_lambda_.1} parent=1 // pred_check_branch
      %26 = sbr.rel (0) target = $region13
    $region12: #{_lambda_.1} parent=1 // pred_region
      _
    $region13: #{_lambda_.1} parent=1 // pred_fallthru
      _
    // Predicated region
    $region14: #{_lambda_.1} parent=1 // pred_check
      _
    $region15: #{_lambda_.1} parent=1 // pred_check_branch
      %28 = sbr.rel (0) target = $region17
    $region16: #{_lambda_.1} parent=1 // pred_region
      _
    $region17: #{_lambda_.1} parent=1 // pred_fallthru
      _
    // Predicated region
    $region18: #{_lambda_.1} parent=1 // pred_check
      _
    $region19: #{_lambda_.1} parent=1 // pred_check_branch
      %30 = sbr.rel (0) target = $region21
    $region20: #{_lambda_.1} parent=1 // pred_region
      _
    $region21: #{_lambda_.1} parent=1 // pred_fallthru
      _
    // Predicated region
    $region22: #{_lambda_.1} parent=1 // pred_check
      _
    $region23: #{_lambda_.1} parent=1 // pred_check_branch
      %32 = sbr.rel (0) target = $region25
    $region24: #{_lambda_.1} parent=1 // pred_region
      %33 = dma.done [#allocation3], 1536
    $region25: #{_lambda_.1} parent=1 // pred_fallthru
      _
    %v35 = vld [vmem:[%s0] sm:$0x3]
    %v36 = vmul.f32 %v35, %v35
    %vm37 = vcmask 254976
    %v38 = vsel %vm37, %v36, 0.0
    %39 = vadd.xlane.f32.xlu0 %v38
    %v40 = vpop.xlane.xlu0 %39
    %v41 = vmax.f32 %v40, 1e-24
    %v42 = vrsqrt.pop %v41
    %v43 = vmul.f32 %v35, %v42
    %v44 = vpack.c.bf16 %v43, %v43
    %v45 = vld [vmem:[#allocation2] sm:$0xff]
    %v46 = vld [vmem:[#allocation2 + $0x8] sm:$0xff]
    %v47 = vld [vmem:[#allocation2 + $0x10] sm:$0xff]
    %v48 = vld [vmem:[#allocation2 + $0x18] sm:$0xff]
    %v49 = vld [vmem:[#allocation2 + $0x20] sm:$0xff]
    %v50 = vld [vmem:[#allocation2 + $0x28] sm:$0xff]
    %v51 = vld [vmem:[#allocation2 + $0x30] sm:$0xff]
    %v52 = vld [vmem:[#allocation2 + $0x38] sm:$0xff]
    %v53 = vld [vmem:[#allocation2 + $0x40] sm:$0xff]
    %v54 = vld [vmem:[#allocation2 + $0x48] sm:$0xff]
    %v55 = vld [vmem:[#allocation2 + $0x50] sm:$0xff]
    %v56 = vld [vmem:[#allocation2 + $0x58] sm:$0xff]
    %v57 = vld [vmem:[%s2] sm:$0x3f]
    %v59 = vlaneseq
    %v60 = vshrl.u32 %v59, 7
    %v61 = vsub.s32 0, %v60
    %v62 = vrot.slane %v57, %v61
    %v63 = vlaneseq
    %v64 = vshrl.u32 %v63, 7
    %v65 = vsub.s32 1, %v64
    %v66 = vrot.slane %v57, %v65
    %v67 = vlaneseq
    %v68 = vshrl.u32 %v67, 7
    %v69 = vsub.s32 2, %v68
    %v70 = vrot.slane %v57, %v69
    %v71 = vlaneseq
    %v72 = vshrl.u32 %v71, 7
    %v73 = vsub.s32 3, %v72
    %v74 = vrot.slane %v57, %v73
    %v75 = vlaneseq
    %v76 = vshrl.u32 %v75, 7
    %v77 = vsub.s32 4, %v76
    %v78 = vrot.slane %v57, %v77
    %v79 = vlaneseq
    %v80 = vshrl.u32 %v79, 7
    %v81 = vsub.s32 5, %v80
    %v82 = vrot.slane %v57, %v81
    %v101 = vunpack.c.l.b16 %v45
    %v102 = vunpack.c.h.b16 %v45
    %v103 = vunpack.c.l.b16 %v46
    %v104 = vunpack.c.h.b16 %v46
    %v105 = vunpack.c.l.b16 %v47
    %v106 = vunpack.c.h.b16 %v47
    %v107 = vunpack.c.l.b16 %v48
    %v108 = vunpack.c.h.b16 %v48
    %v109 = vunpack.c.l.b16 %v49
    %v110 = vunpack.c.h.b16 %v49
    %v111 = vunpack.c.l.b16 %v50
    %v112 = vunpack.c.h.b16 %v50
    %v113 = vunpack.c.l.b16 %v51
    %v114 = vunpack.c.h.b16 %v51
    %v115 = vunpack.c.l.b16 %v52
    %v116 = vunpack.c.h.b16 %v52
    %v117 = vunpack.c.l.b16 %v53
    %v118 = vunpack.c.h.b16 %v53
    %v119 = vunpack.c.l.b16 %v54
    %v120 = vunpack.c.h.b16 %v54
    %v121 = vunpack.c.l.b16 %v55
    %v122 = vunpack.c.h.b16 %v55
    %v123 = vunpack.c.l.b16 %v56
    %v124 = vunpack.c.h.b16 %v56
    %v125 = vpack.c.b16 %v107, %v101
    %v126 = vpack.c.b16 %v108, %v102
    %v127 = vpack.c.b16 %v109, %v103
    %v128 = vpack.c.b16 %v110, %v104
    %v129 = vpack.c.b16 %v111, %v105
    %v130 = vpack.c.b16 %v112, %v106
    %v131 = vpack.c.b16 %v119, %v113
    %v132 = vpack.c.b16 %v120, %v114
    %v133 = vpack.c.b16 %v121, %v115
    %v134 = vpack.c.b16 %v122, %v116
    %v135 = vpack.c.b16 %v123, %v117
    %v136 = vpack.c.b16 %v124, %v118
    %vm149 = vcmask 261120
    %v151 = vsel %vm149, %v44, 0
    %153 = vmatprep.subr.bf16.mxu0 0
    %154 = vmatpush1.bf16.msra.mxu0 0
    %155 = vmatprep.subr.bf16.mxu0 0
    %156 = vmatpush1.bf16.msra.mxu0 0
    %157 = vmatprep.subr.bf16.mxu0 0
    %158 = vmatpush1.bf16.msra.mxu0 0
    %159 = vmatprep.subr.bf16.mxu0 0
    %160 = vmatpush1.bf16.msra.mxu0 0
    %161 = vmatprep.subr.bf16.mxu0 0
    %162 = vmatpush1.bf16.msra.mxu0 0
    %163 = vmatprep.subr.bf16.mxu0 0
    %164 = vmatpush1.bf16.msra.mxu0 0
    %165 = vmatprep.subr.bf16.mxu0 %v132
    %166 = vmatpush1.bf16.msra.mxu0 %v131
    %167 = vmatprep.subr.bf16.mxu0 %v126
    %168 = vmatpush1.bf16.msra.mxu0 %v125
    %169 = vmatprep.subr.bf16.mxu0 0
    %170 = vmatpush2.bf16.msra.mxu0 0
    %171 = vmatprep.subr.bf16.mxu0 0
    %172 = vmatpush2.bf16.msra.mxu0 0
    %173 = vmatprep.subr.bf16.mxu0 0
    %174 = vmatpush2.bf16.msra.mxu0 0
    %175 = vmatprep.subr.bf16.mxu0 0
    %176 = vmatpush2.bf16.msra.mxu0 0
    %177 = vmatprep.subr.bf16.mxu0 0
    %178 = vmatpush2.bf16.msra.mxu0 0
    %179 = vmatprep.subr.bf16.mxu0 0
    %180 = vmatpush2.bf16.msra.mxu0 0
    %181 = vmatprep.subr.bf16.mxu0 0
    %182 = vmatpush2.bf16.msra.mxu0 0
    %183 = vmatprep.subr.bf16.mxu0 0
    %184 = vmatpush2.bf16.msra.mxu0 0
    %185 = vmatprep.mubr.bf16.mxu0 0
    %186 = vmatmul.mubr.bf16.gmra.mxu0 %v151
    %v187 = vpop.f32.mrf.mxu0
    %v188 = vadd.f32 %v62, %v187
    %v189 = vpop.f32.mrf.mxu0
    %v190 = vadd.f32 %v66, %v189
    %v191 = vpop.f32.mrf.mxu0
    %v192 = vpop.f32.mrf.mxu0
    %193 = vdwg.mxu0
    %194 = vmatprep.subr.bf16.mxu0 0
    %195 = vmatpush1.bf16.msra.mxu0 0
    %196 = vmatprep.subr.bf16.mxu0 0
    %197 = vmatpush1.bf16.msra.mxu0 0
    %198 = vmatprep.subr.bf16.mxu0 0
    %199 = vmatpush1.bf16.msra.mxu0 0
    %200 = vmatprep.subr.bf16.mxu0 0
    %201 = vmatpush1.bf16.msra.mxu0 0
    %202 = vmatprep.subr.bf16.mxu0 0
    %203 = vmatpush1.bf16.msra.mxu0 0
    %204 = vmatprep.subr.bf16.mxu0 0
    %205 = vmatpush1.bf16.msra.mxu0 0
    %206 = vmatprep.subr.bf16.mxu0 %v134
    %207 = vmatpush1.bf16.msra.mxu0 %v133
    %208 = vmatprep.subr.bf16.mxu0 %v128
    %209 = vmatpush1.bf16.msra.mxu0 %v127
    %210 = vmatprep.subr.bf16.mxu0 0
    %211 = vmatpush2.bf16.msra.mxu0 0
    %212 = vmatprep.subr.bf16.mxu0 0
    %213 = vmatpush2.bf16.msra.mxu0 0
    %214 = vmatprep.subr.bf16.mxu0 0
    %215 = vmatpush2.bf16.msra.mxu0 0
    %216 = vmatprep.subr.bf16.mxu0 0
    %217 = vmatpush2.bf16.msra.mxu0 0
    %218 = vmatprep.subr.bf16.mxu0 0
    %219 = vmatpush2.bf16.msra.mxu0 0
    %220 = vmatprep.subr.bf16.mxu0 0
    %221 = vmatpush2.bf16.msra.mxu0 0
    %222 = vmatprep.subr.bf16.mxu0 0
    %223 = vmatpush2.bf16.msra.mxu0 0
    %224 = vmatprep.subr.bf16.mxu0 0
    %225 = vmatpush2.bf16.msra.mxu0 0
    %226 = vmatprep.mubr.bf16.mxu0 0
    %227 = vmatmul.mubr.bf16.gmra.mxu0 %v151
    %v228 = vpop.f32.mrf.mxu0
    %v229 = vadd.f32 %v70, %v228
    %v230 = vpop.f32.mrf.mxu0
    %v231 = vadd.f32 %v74, %v230
    %v232 = vpop.f32.mrf.mxu0
    %v233 = vpop.f32.mrf.mxu0
    %234 = vdwg.mxu0
    %235 = vmatprep.subr.bf16.mxu0 0
    %236 = vmatpush1.bf16.msra.mxu0 0
    %237 = vmatprep.subr.bf16.mxu0 0
    %238 = vmatpush1.bf16.msra.mxu0 0
    %239 = vmatprep.subr.bf16.mxu0 0
    %240 = vmatpush1.bf16.msra.mxu0 0
    %241 = vmatprep.subr.bf16.mxu0 0
    %242 = vmatpush1.bf16.msra.mxu0 0
    %243 = vmatprep.subr.bf16.mxu0 0
    %244 = vmatpush1.bf16.msra.mxu0 0
    %245 = vmatprep.subr.bf16.mxu0 0
    %246 = vmatpush1.bf16.msra.mxu0 0
    %247 = vmatprep.subr.bf16.mxu0 %v136
    %248 = vmatpush1.bf16.msra.mxu0 %v135
    %249 = vmatprep.subr.bf16.mxu0 %v130
    %250 = vmatpush1.bf16.msra.mxu0 %v129
    %251 = vmatprep.subr.bf16.mxu0 0
    %252 = vmatpush2.bf16.msra.mxu0 0
    %253 = vmatprep.subr.bf16.mxu0 0
    %254 = vmatpush2.bf16.msra.mxu0 0
    %255 = vmatprep.subr.bf16.mxu0 0
    %256 = vmatpush2.bf16.msra.mxu0 0
    %257 = vmatprep.subr.bf16.mxu0 0
    %258 = vmatpush2.bf16.msra.mxu0 0
    %259 = vmatprep.subr.bf16.mxu0 0
    %260 = vmatpush2.bf16.msra.mxu0 0
    %261 = vmatprep.subr.bf16.mxu0 0
    %262 = vmatpush2.bf16.msra.mxu0 0
    %263 = vmatprep.subr.bf16.mxu0 0
    %264 = vmatpush2.bf16.msra.mxu0 0
    %265 = vmatprep.subr.bf16.mxu0 0
    %266 = vmatpush2.bf16.msra.mxu0 0
    %267 = vmatprep.mubr.bf16.mxu0 0
    %268 = vmatmul.mubr.bf16.gmra.mxu0 %v151
    %v269 = vpop.f32.mrf.mxu0
    %v270 = vadd.f32 %v78, %v269
    %v271 = vpop.f32.mrf.mxu0
    %v272 = vadd.f32 %v82, %v271
    %v273 = vpop.f32.mrf.mxu0
    %v274 = vpop.f32.mrf.mxu0
    %275 = vdwg.mxu0
    %v276 = vtanh.pop %v188
    %v277 = vtanh.pop %v190
    %v278 = vtanh.pop %v229
    %v279 = vtanh.pop %v231
    %v280 = vtanh.pop %v270
    %v281 = vtanh.pop %v272
    %v282 = vld [vmem:[%s4] sm:$0x3f]
    %v284 = vlaneseq
    %v285 = vshrl.u32 %v284, 7
    %v286 = vsub.s32 0, %v285
    %v287 = vrot.slane %v282, %v286
    %v288 = vlaneseq
    %v289 = vshrl.u32 %v288, 7
    %v290 = vsub.s32 1, %v289
    %v291 = vrot.slane %v282, %v290
    %v292 = vlaneseq
    %v293 = vshrl.u32 %v292, 7
    %v294 = vsub.s32 2, %v293
    %v295 = vrot.slane %v282, %v294
    %v296 = vlaneseq
    %v297 = vshrl.u32 %v296, 7
    %v298 = vsub.s32 3, %v297
    %v299 = vrot.slane %v282, %v298
    %v300 = vlaneseq
    %v301 = vshrl.u32 %v300, 7
    %v302 = vsub.s32 4, %v301
    %v303 = vrot.slane %v282, %v302
    %v304 = vlaneseq
    %v305 = vshrl.u32 %v304, 7
    %v306 = vsub.s32 5, %v305
    %v307 = vrot.slane %v282, %v306
    %v314 = vmul.f32 %v276, %v287
    %v315 = vmul.f32 %v277, %v291
    %v316 = vmul.f32 %v278, %v295
    %v317 = vmul.f32 %v279, %v299
    %v318 = vmul.f32 %v280, %v303
    %v319 = vmul.f32 %v281, %v307
    %v320 = vld [vmem:[%s3] sm:$0x3f]
    %v322 = vlaneseq
    %v323 = vshrl.u32 %v322, 7
    %v324 = vsub.s32 0, %v323
    %v325 = vrot.slane %v320, %v324
    %v326 = vlaneseq
    %v327 = vshrl.u32 %v326, 7
    %v328 = vsub.s32 1, %v327
    %v329 = vrot.slane %v320, %v328
    %v330 = vlaneseq
    %v331 = vshrl.u32 %v330, 7
    %v332 = vsub.s32 2, %v331
    %v333 = vrot.slane %v320, %v332
    %v334 = vlaneseq
    %v335 = vshrl.u32 %v334, 7
    %v336 = vsub.s32 3, %v335
    %v337 = vrot.slane %v320, %v336
    %v338 = vlaneseq
    %v339 = vshrl.u32 %v338, 7
    %v340 = vsub.s32 4, %v339
    %v341 = vrot.slane %v320, %v340
    %v342 = vlaneseq
    %v343 = vshrl.u32 %v342, 7
    %v344 = vsub.s32 5, %v343
    %v345 = vrot.slane %v320, %v344
    %v352 = vadd.f32 %v314, %v325
    %v353 = vadd.f32 %v315, %v329
    %v354 = vadd.f32 %v316, %v333
    %v355 = vadd.f32 %v317, %v337
    %v356 = vadd.f32 %v318, %v341
    %v357 = vadd.f32 %v319, %v345
    %v358 = vmax.f32 %v352, 0.0
    %v359 = vmax.f32 %v353, 0.0
    %v360 = vmax.f32 %v354, 0.0
    %v361 = vmax.f32 %v355, 0.0
    %v362 = vmax.f32 %v356, 0.0
    %v363 = vmax.f32 %v357, 0.0
    %v364 = vmin.f32 %v358, 1.0
    %v365 = vmin.f32 %v359, 1.0
    %v366 = vmin.f32 %v360, 1.0
    %v367 = vmin.f32 %v361, 1.0
    %v368 = vmin.f32 %v362, 1.0
    %v369 = vmin.f32 %v363, 1.0
    %v370 = vpack.c.bf16 %v364, %v364
    %v371 = vpack.c.bf16 %v365, %v365
    %v372 = vpack.c.bf16 %v366, %v366
    %v373 = vpack.c.bf16 %v367, %v367
    %v374 = vpack.c.bf16 %v368, %v368
    %v375 = vpack.c.bf16 %v369, %v369
    %v382 = vcombine.low %v370, %v371
    %v383 = vcombine.low %v372, %v373
    %v384 = vcombine.low %v374, %v375
    %v386 = vunpack.c.l.s4 1966171168
    %v387 = vunpack.c.0.s8 %v386
    %v388 = vlaneseq
    %v389 = vshrl.u32 %v388, 7
    %v390 = vsub.s32 %v387, %v389
    %v391 = vrot.slane %v382, %v390
    %v393 = vunpack.c.l.s4 1966171168
    %v394 = vunpack.c.0.s8 %v393
    %v395 = vlaneseq
    %v396 = vshrl.u32 %v395, 7
    %v397 = vsub.s32 %v394, %v396
    %v398 = vrot.slane %v383, %v397
    %v400 = vunpack.c.l.s4 1966171168
    %v401 = vunpack.c.0.s8 %v400
    %v402 = vlaneseq
    %v403 = vshrl.u32 %v402, 7
    %v404 = vsub.s32 %v401, %v403
    %v405 = vrot.slane %v384, %v404
    %v406 = vcombine.low %v391, %v398
    %v408 = vunpack.c.l.s4 1966171168
    %v409 = vunpack.c.0.s8 %v408
    %v410 = vlaneseq
    %v411 = vshrl.u32 %v410, 7
    %v412 = vsub.s32 %v409, %v411
    %v413 = vrot.slane %v406, %v412
    %v415 = vunpack.c.l.s4 1966171168
    %v416 = vunpack.c.0.s8 %v415
    %v417 = vlaneseq
    %v418 = vshrl.u32 %v417, 7
    %v419 = vsub.s32 %v416, %v418
    %v420 = vrot.slane %v405, %v419
    %v421 = vcombine.low %v413, %v420
    %423 = vst [vmem:[%s5] sm:$0x3f] %v421
    // Predicated region
    $region26: #{_lambda_.1} parent=1 // pred_check
      _
    $region27: #{_lambda_.1} parent=1 // pred_check_branch
      %425 = sbr.rel (0) target = $region29
    $region28: #{_lambda_.1} parent=1 // pred_region
      _
    $region29: #{_lambda_.1} parent=1 // pred_fallthru
      _
    // Predicated region
    $region30: #{_lambda_.1} parent=1 // pred_check
      _
    $region31: #{_lambda_.1} parent=1 // pred_check_branch
      %427 = sbr.rel (0) target = $region33
    $region32: #{_lambda_.1} parent=1 // pred_region
      _
    $region33: #{_lambda_.1} parent=1 // pred_fallthru
      _
    %428 = vsyncpa [#allocation3], 1

</llo_original>
